<compile_context>
chip_gen: v7x
topology: tpu7x:2x2x1
jax: 0.10.0
libtpu: 0.0.40
codegen_flags: <defaults>
</compile_context>

<pallas_src>
import numpy as np
import jax
import jax.numpy as jnp
from jax import lax
from jax.experimental import pallas as pl
from jax.experimental.pallas import tpu as pltpu

CONF_THRES = 0.25
IOU_THRES = 0.45
MAX_DET = 1000                          # forward() passes max_det=1000
MAXIMUM_NUMBER_OF_BOXES_TO_NMS = 30000
MAXIMUM_BBOX_WIDTH_HEIGHT = 7680.0
NMS_TOPK = 2048                         # candidate cap fed to greedy NMS

VMEM_LIMIT = 32 * 1024 * 1024           # explicit scoped-VMEM cap (safe on v5e/v6e/v7x)


def _round_up(x, m):
    return (x + m - 1) // m * m


def _pow2_tile(desired, limit):
    """Largest power-of-two multiple of 128 that is <= max(desired,128) and <= round_up(limit,128)."""
    cap = max(128, _round_up(limit, 128))
    t = 128
    while t * 2 <= min(max(desired, 128), cap):
        t *= 2
    return t


# ----------------------- Pallas kernel 1: synthetic YOLO head ------------------------
def _head_kernel(x_ref, w_ref, b_ref, s_ref, o_ref):
    # x_ref: (1, C_pad, TP) f32  -- pixels on lanes (NCHW consumed natively)
    # w_ref: (C_pad, Cout_pad) bf16 resident, b/s: (1, Cout_pad) f32 resident
    # o_ref: (1, TP, Cout_pad) bf16 lane-dense output
    x = x_ref[0].astype(jnp.bfloat16)                        # in-kernel cast (no extra HBM pass)
    # transposed-LHS matmul on the MXU: contract the channel dim of both operands.
    z = lax.dot_general(x, w_ref[...],
                        dimension_numbers=(((0,), (0,)), ((), ())),
                        preferred_element_type=jnp.float32)  # (TP, Cout_pad) f32
    z = z + b_ref[...]
    # sigmoid with an approximate EUP reciprocal (output is bf16 anyway, so the
    # approx error is invisible after the cast).
    y = pl.reciprocal(1.0 + jnp.exp(-z), approx=True)
    o_ref[0] = (y * s_ref[...]).astype(o_ref.dtype)


def yolo_head(x_nchw, w, b, num_anchors, num_classes, img_size, tp, hw_pad):
    """Synthetic detection head: 1x1 conv + sigmoid + pixel-coordinate scaling.

    Returns a lane-dense bf16 tensor of shape (B, hw_pad, Cout_pad) where
    Cout_pad = round_up(A*(5+M), 128); padded columns are exactly zero.
    """
    B, C, H, W = x_nchw.shape
    HW = H * W
    Cg = 5 + num_classes
    Cout = num_anchors * Cg
    Cout_pad = _round_up(Cout, 128)
    C_pad = _round_up(C, 8)

    # NCHW consumed natively: reshape is a view, no NHWC transpose.
    x3 = x_nchw.reshape(B, C, HW)
    if C_pad != C or hw_pad != HW:
        # tiny alignment pad (no-op for real models where C % 8 == 0 and HW | tile)
        x3 = jnp.pad(x3, ((0, 0), (0, C_pad - C), (0, hw_pad - HW)))

    w_pad = jnp.pad(w, ((0, C_pad - C), (0, Cout_pad - Cout))).astype(jnp.bfloat16)
    b_pad = jnp.pad(b.reshape(1, Cout).astype(jnp.float32), ((0, 0), (0, Cout_pad - Cout)))

    # per-channel post-sigmoid scale: img_size for x/y/w/h, 1 for obj/cls, 0 for
    # padded columns so they contribute nothing to the downstream aggregation.
    scale_np = np.zeros((1, Cout_pad), np.float32)
    for a in range(num_anchors):
        base = a * Cg
        scale_np[0, base:base + 4] = img_size
        scale_np[0, base + 4:base + Cg] = 1.0
    scale = jnp.asarray(scale_np)

    out = pl.pallas_call(
        _head_kernel,
        out_shape=jax.ShapeDtypeStruct((B, hw_pad, Cout_pad), jnp.bfloat16),
        grid=(B, hw_pad // tp),
        in_specs=[
            pl.BlockSpec((1, C_pad, tp), lambda bi, pi: (bi, 0, pi)),   # pixel tile (pipelined)
            pl.BlockSpec((C_pad, Cout_pad), lambda bi, pi: (0, 0)),     # weights resident
            pl.BlockSpec((1, Cout_pad), lambda bi, pi: (0, 0)),         # bias resident
            pl.BlockSpec((1, Cout_pad), lambda bi, pi: (0, 0)),         # scale resident
        ],
        out_specs=pl.BlockSpec((1, tp, Cout_pad), lambda bi, pi: (bi, pi, 0)),
        compiler_params=pltpu.CompilerParams(
            dimension_semantics=("parallel", "parallel"),
            vmem_limit_bytes=VMEM_LIMIT),
    )(x3, w_pad, b_pad, scale)
    return out


# ----------------------- NMS selection mask (plain JAX) ------------------------------
def _xywh2xyxy(b):
    x, y, w, h = b[..., 0], b[..., 1], b[..., 2], b[..., 3]
    return jnp.stack([x - w / 2, y - h / 2, x + w / 2, y + h / 2], axis=-1)


def _box_iou(a, b):
    area_a = (a[:, 2] - a[:, 0]) * (a[:, 3] - a[:, 1])
    area_b = (b[:, 2] - b[:, 0]) * (b[:, 3] - b[:, 1])
    lt = jnp.maximum(a[:, None, :2], b[None, :, :2])
    rb = jnp.minimum(a[:, None, 2:], b[None, :, 2:])
    wh = jnp.maximum(rb - lt, 0.0)
    inter = wh[..., 0] * wh[..., 1]
    return inter / (area_a[:, None] + area_b[None, :] - inter + 1e-9)


def _nms_keep_mask(pred_b, conf_thres, iou_thres, max_det):
    # TODO(synk): torchvision.ops.nms is inherently sequential greedy suppression;
    # it stays in plain JAX (lax.fori_loop).  A Pallas streaming-NMS (IoU row tiles
    # against the kept set) would avoid the K x K IoU matrix entirely.
    N = pred_b.shape[0]
    obj = pred_b[:, 4].astype(jnp.float32)
    xc = obj > conf_thres

    # compacted indices of anchors passing the objectness filter (like torch nonzero)
    idx1 = jnp.argsort(jnp.logical_not(xc), stable=True)          # True entries first
    valid1 = jnp.arange(N) < jnp.sum(xc)

    hc = pred_b[idx1].astype(jnp.float32)                         # [N, 5+M]
    hc_scores = hc[:, 5:] * hc[:, 4:5]                            # cls * obj
    hc_conf = jnp.max(hc_scores, axis=1)
    hc_j = jnp.argmax(hc_scores, axis=1)
    hc_box = _xywh2xyxy(hc[:, :4]) + hc_j[:, None].astype(jnp.float32) * MAXIMUM_BBOX_WIDTH_HEIGHT

    # second filter: max class confidence > conf_thres (compacted again)
    valid2_in1 = valid1 & (hc_conf > conf_thres)
    pos2 = jnp.argsort(jnp.logical_not(valid2_in1), stable=True)  # positions into the idx1 list
    valid2 = jnp.arange(N) < jnp.sum(valid2_in1)
    conf2 = jnp.where(valid2, hc_conf[pos2], -1.0)
    box2 = hc_box[pos2]

    # sort by confidence (descending); bound the working set before the K x K IoU.
    # max_det is 1000, so NMS_TOPK=2048 keeps the IoU matrix small (<=16 MiB f32).
    K = min(N, NMS_TOPK, MAXIMUM_NUMBER_OF_BOXES_TO_NMS)
    order = jnp.argsort(-conf2)[:K]
    sb = box2[order]
    sv = valid2[order]
    iou = _box_iou(sb, sb)

    def body(i, carry):
        keep, nkept = carry
        suppressed = jnp.any(keep & (iou[i] > iou_thres))
        k = sv[i] & jnp.logical_not(suppressed) & (nkept < max_det)
        return keep.at[i].set(k), nkept + k.astype(jnp.int32)

    keep, _ = lax.fori_loop(0, K, body, (jnp.zeros((K,), bool), jnp.int32(0)))

    # Original anchor index of candidate i goes through BOTH compactions:
    # idx1[pos2[order[i]]].  (The original torch code indexes xc.nonzero() with the
    # post-second-filter positions directly; we use the consistent mapping so the
    # keep mask lands on the anchors that were actually selected.)
    orig_idx = idx1[pos2[order]]
    picked = jnp.where(keep, orig_idx, N)                          # N = dummy slot
    mask = jnp.zeros((N + 1,), jnp.float32).at[picked].set(
        jnp.where(keep, 1.0, 0.0))[:N]
    return mask


# ----------------------- Pallas kernel 2: XAI class aggregation ----------------------
def _xai_agg_kernel(pred_ref, wgt_ref, out_ref):
    # pred_ref: (1, TN, Cout_pad) bf16  -- head output read in place (pixels on sublanes)
    # wgt_ref : (1, A, TN)        bf16  -- keep_mask * objectness, per anchor
    # out_ref : (1, 1, A, Cout_pad) f32 -- resident accumulator over the reduction axis
    @pl.when(pl.program_id(2) == 0)
    def _():
        out_ref[...] = jnp.zeros_like(out_ref)

    # contraction over pixels on the (otherwise idle) MXU: no per-step XLU lane
    # reduce, no (M, TN) f32 temporaries / vreg spills.
    out_ref[...] += jnp.dot(wgt_ref[0], pred_ref[0],
                            preferred_element_type=jnp.float32)[None, None]


def xai_aggregate(pred_hw, wgt_n, num_anchors, num_classes, hw, tn, splits):
    """out[b, m] = sum_{p,a} wgt[b, p*A+a] * pred_hw[b, p, a*(5+M)+5+m]."""
    B, HW_pad, Cout_pad = pred_hw.shape
    A, M = num_anchors, num_classes
    Cg = 5 + M
    Cout = A * Cg
    S, TN = splits, tn
    assert HW_pad % (S * TN) == 0
    KPS = HW_pad // (S * TN)

    # (B, N) keep weights -> anchor-major (B, A, HW_pad); tiny tensor, cheap reshuffle.
    wgt_ap = jnp.transpose(wgt_n.reshape(B, hw, A), (0, 2, 1))
    if HW_pad > hw:
        wgt_ap = jnp.pad(wgt_ap, ((0, 0), (0, 0), (0, HW_pad - hw)))   # padded pixels -> 0
    wgt_ap = wgt_ap.astype(jnp.bfloat16)

    acc = pl.pallas_call(
        _xai_agg_kernel,
        out_shape=jax.ShapeDtypeStruct((B, S, A, Cout_pad), jnp.float32),
        grid=(B, S, KPS),
        in_specs=[
            pl.BlockSpec((1, TN, Cout_pad), lambda b, s, k: (b, s * KPS + k, 0)),
            pl.BlockSpec((1, A, TN), lambda b, s, k: (b, 0, s * KPS + k)),
        ],
        out_specs=pl.BlockSpec((1, 1, A, Cout_pad), lambda b, s, k: (b, s, 0, 0)),
        compiler_params=pltpu.CompilerParams(
            # leading split axis keeps both v7x TensorCores busy even at B=1
            dimension_semantics=("parallel", "parallel", "arbitrary"),
            vmem_limit_bytes=VMEM_LIMIT),
    )(pred_hw, wgt_ap)

    acc = acc.sum(axis=1)                                  # combine core-split partials
    accd = acc[:, :, :Cout].reshape(B, A, A, Cg)           # (B, a_weight, a_channel, 5+M)
    ar = jnp.arange(A)
    return accd[:, ar, ar, 5:].sum(axis=1)                 # diagonal anchors -> (B, M)


# ----------------------- full forward (model -> xai_non_max_suppression) -------------
def xai_yolo_forward(x, w, b, num_anchors, num_classes, img_size,
                     conf=CONF_THRES, iou=IOU_THRES, max_det=MAX_DET,
                     head_tp=1024, agg_tn=8192, agg_splits=2, return_aux=False):
    B, C, H, W = x.shape
    A, M = num_anchors, num_classes
    HW = H * W
    Cg = 5 + M
    Cout = A * Cg

    # shared pixel tiling: power-of-two-x128 tiles so one HW_pad serves both kernels.
    S = 2 if agg_splits >= 2 else 1
    TP = _pow2_tile(head_tp, HW)
    TN = _pow2_tile(agg_tn, max(HW // S, 128))
    HW_pad = _round_up(HW, max(TP, S * TN))

    # kernel 1: detection head, bf16 lane-dense output, no input transpose.
    pred_hw = yolo_head(x, w, b, A, M, img_size, tp=TP, hw_pad=HW_pad)  # (B, HW_pad, Cout_pad)

    # narrow [B, N, 5+M] view is materialized for the plain-JAX NMS path only.
    pred_nms = pred_hw[:, :HW, :Cout].reshape(B, HW * A, Cg)
    keep_mask = jax.vmap(lambda p: _nms_keep_mask(p, conf, iou, max_det))(pred_nms)  # (B, N)
    wgt = (keep_mask * pred_nms[..., 4].astype(jnp.float32)).astype(jnp.bfloat16)    # keep*obj

    # kernel 2: reads the head output in place (no transpose, no [:Cout] copy);
    # box/obj channels ride along in the same rows — repacking a cls-only tensor
    # would cost a full extra read+write of pred and save <5% of the agg read.
    out = xai_aggregate(pred_hw, wgt, A, M, HW, tn=TN, splits=S)                      # (B, M)

    if return_aux:
        return out, pred_nms, wgt
    return out


if __name__ == "__main__":
    B, C, H, W = 2, 4, 16, 32
    A, M = 3, 8                       # anchors per cell, number of classes
    IMG = float(W)
    Cg = 5 + M
    Cout = A * Cg

    key = jax.random.PRNGKey(0)
    kx, kw = jax.random.split(key)
    x = jax.random.normal(kx, (B, C, H, W), jnp.float32)
    w = jax.random.normal(kw, (C, Cout), jnp.float32) * 0.5
    b_np = np.zeros((Cout,), np.float32)
    for a in range(A):                # bias objectness / class logits so detections exist
        b_np[a * Cg + 4] = 1.0
        b_np[a * Cg + 5:(a + 1) * Cg] = 0.5
    b = jnp.asarray(b_np)

    # small tiles so the test exercises multi-step head pipelining, the chunked
    # (arbitrary-axis) MXU aggregation AND the 2-way core split of the reduction.
    HEAD_TP, AGG_TN, AGG_SPLITS = 128, 128, 2

    fwd = jax.jit(lambda xx: xai_yolo_forward(
        xx, w, b, A, M, IMG,
        head_tp=HEAD_TP, agg_tn=AGG_TN, agg_splits=AGG_SPLITS, return_aux=True))
    out, pred_nms, wgt = jax.block_until_ready(fwd(x))
    assert out.shape == (B, M) and out.dtype == jnp.float32

    # sanity check: Pallas MXU aggregation matches a pure-JAX reference built from
    # the exact same bf16 head output and keep weights (only summation order differs).
    ref = jnp.einsum("bn,bnm->bm", wgt.astype(jnp.float32),
                     pred_nms[..., 5:].astype(jnp.float32))
    np.testing.assert_allclose(np.asarray(out), np.asarray(ref), rtol=1e-2, atol=1e-2)

    print("KERNEL_OK")
</pallas_src>

<mosaic_0001>
module attributes {stable_mosaic.version = 11 : i64} {
  func.func private @main(%arg0: i32) attributes {dimension_semantics = [#tpu.dimension_semantics<core_parallel>], iteration_bounds = array<i64: 2>, tpu.core_type = #tpu.core_type<sc_scalar_subcore>, window_params = []} {
    return
  }
}

module attributes {stable_mosaic.version = 11 : i64} {
  func.func private @main(%arg0: i32) attributes {dimension_semantics = [#tpu.dimension_semantics<core_parallel>], iteration_bounds = array<i64: 2>, tpu.core_type = #tpu.core_type<sc_scalar_subcore>, window_params = []} {
    return
  }
}

module attributes {stable_mosaic.version = 11 : i64} {
  func.func @_head_kernel(%arg0: i32, %arg1: i32, %arg2: memref<1x8x128xf32, #tpu.memory_space<vmem>>, %arg3: memref<8x128xbf16, #tpu.memory_space<vmem>>, %arg4: memref<1x128xf32, #tpu.memory_space<vmem>>, %arg5: memref<1x128xf32, #tpu.memory_space<vmem>>, %arg6: memref<1x128x128xbf16, #tpu.memory_space<vmem>>) attributes {dimension_semantics = [#tpu.dimension_semantics<parallel>, #tpu.dimension_semantics<parallel>], iteration_bounds = array<i64: 2, 4>, scalar_prefetch = 0 : i64, scratch_operands = 0 : i64, tpu.core_type = #tpu.core_type<tc>, window_params = [{transform_indices = @transform_0, window_bounds = array<i64: 1, 8, 128>}, {pipeline_mode = #tpu.pipeline_mode<synchronous>, transform_indices = @transform_1, window_bounds = array<i64: 8, 128>}, {pipeline_mode = #tpu.pipeline_mode<synchronous>, transform_indices = @transform_2, window_bounds = array<i64: 1, 128>}, {pipeline_mode = #tpu.pipeline_mode<synchronous>, transform_indices = @transform_3, window_bounds = array<i64: 1, 128>}, {transform_indices = @transform_4, window_bounds = array<i64: 1, 128, 128>}]} {
    %c0 = arith.constant 0 : index
    %c0_0 = arith.constant 0 : index
    %c0_1 = arith.constant 0 : index
    %0 = vector.load %arg2[%c0, %c0_0, %c0_1] : memref<1x8x128xf32, #tpu.memory_space<vmem>>, vector<1x8x128xf32>
    %1 = vector.shape_cast %0 : vector<1x8x128xf32> to vector<8x128xf32>
    %2 = arith.truncf %1 : vector<8x128xf32> to vector<8x128xbf16>
    %c0_2 = arith.constant 0 : index
    %c0_3 = arith.constant 0 : index
    %3 = vector.load %arg3[%c0_2, %c0_3] : memref<8x128xbf16, #tpu.memory_space<vmem>>, vector<8x128xbf16>
    %cst = arith.constant dense<0.000000e+00> : vector<128x128xf32>
    %4 = tpu.matmul %2, %3, %cst {dimension_numbers = #tpu.dot_dimension_numbers<[0], [0], [1], [1], [0, 1, 1, 1], [], []>} : vector<8x128xbf16>, vector<8x128xbf16>, vector<128x128xf32> -> vector<128x128xf32>
    %c0_4 = arith.constant 0 : index
    %c0_5 = arith.constant 0 : index
    %5 = vector.load %arg4[%c0_4, %c0_5] : memref<1x128xf32, #tpu.memory_space<vmem>>, vector<1x128xf32>
    %6 = vector.broadcast %5 : vector<1x128xf32> to vector<128x128xf32>
    %7 = arith.addf %4, %6 : vector<128x128xf32>
    %cst_6 = arith.constant 0.000000e+00 : f32
    %8 = vector.broadcast %cst_6 : f32 to vector<128x128xf32>
    %9 = arith.subf %8, %7 : vector<128x128xf32>
    %10 = math.exp %9 : vector<128x128xf32>
    %cst_7 = arith.constant 1.000000e+00 : f32
    %11 = vector.broadcast %cst_7 : f32 to vector<128x128xf32>
    %12 = arith.addf %11, %10 : vector<128x128xf32>
    %13 = tpu.reciprocal %12 {approx = true} : vector<128x128xf32> -> vector<128x128xf32>
    %c0_8 = arith.constant 0 : index
    %c0_9 = arith.constant 0 : index
    %14 = vector.load %arg5[%c0_8, %c0_9] : memref<1x128xf32, #tpu.memory_space<vmem>>, vector<1x128xf32>
    %15 = vector.broadcast %14 : vector<1x128xf32> to vector<128x128xf32>
    %16 = arith.mulf %13, %15 : vector<128x128xf32>
    %17 = arith.truncf %16 : vector<128x128xf32> to vector<128x128xbf16>
    %c0_10 = arith.constant 0 : index
    %c0_11 = arith.constant 0 : index
    %c0_12 = arith.constant 0 : index
    %18 = vector.load %arg6[%c0_10, %c0_11, %c0_12] : memref<1x128x128xbf16, #tpu.memory_space<vmem>>, vector<1x128x128xbf16>
    %19 = vector.shape_cast %18 : vector<1x128x128xbf16> to vector<128x128xbf16>
    %20 = vector.shape_cast %17 : vector<128x128xbf16> to vector<1x128x128xbf16>
    tpu.vector_store %arg6[%c0_10, %c0_11, %c0_12], %20 {strides = array<i32>} : memref<1x128x128xbf16, #tpu.memory_space<vmem>>, vector<1x128x128xbf16>,
    return
  }
  func.func @transform_0(%arg0: i32, %arg1: i32) -> (i32, i32, i32) {
    %c0_i32 = arith.constant 0 : i32
    %c0_i32_0 = arith.constant 0 : i32
    return %arg0, %c0_i32, %arg1 : i32, i32, i32
  }
  func.func @transform_1(%arg0: i32, %arg1: i32) -> (i32, i32) {
    %c0_i32 = arith.constant 0 : i32
    %c0_i32_0 = arith.constant 0 : i32
    %c0_i32_1 = arith.constant 0 : i32
    return %c0_i32, %c0_i32_0 : i32, i32
  }
  func.func @transform_2(%arg0: i32, %arg1: i32) -> (i32, i32) {
    %c0_i32 = arith.constant 0 : i32
    %c0_i32_0 = arith.constant 0 : i32
    %c0_i32_1 = arith.constant 0 : i32
    return %c0_i32, %c0_i32_0 : i32, i32
  }
  func.func @transform_3(%arg0: i32, %arg1: i32) -> (i32, i32) {
    %c0_i32 = arith.constant 0 : i32
    %c0_i32_0 = arith.constant 0 : i32
    %c0_i32_1 = arith.constant 0 : i32
    return %c0_i32, %c0_i32_0 : i32, i32
  }
  func.func @transform_4(%arg0: i32, %arg1: i32) -> (i32, i32, i32) {
    %c0_i32 = arith.constant 0 : i32
    %c0_i32_0 = arith.constant 0 : i32
    return %arg0, %arg1, %c0_i32 : i32, i32, i32
  }
}

module attributes {stable_mosaic.version = 11 : i64} {
  func.func @_xai_agg_kernel(%arg0: i32, %arg1: i32, %arg2: i32, %arg3: memref<1x128x128xbf16, #tpu.memory_space<vmem>>, %arg4: memref<1x3x128xbf16, #tpu.memory_space<vmem>>, %arg5: memref<1x1x3x128xf32, #tpu.memory_space<vmem>>) attributes {dimension_semantics = [#tpu.dimension_semantics<parallel>, #tpu.dimension_semantics<parallel>, #tpu.dimension_semantics<arbitrary>], iteration_bounds = array<i64: 2, 2, 2>, scalar_prefetch = 0 : i64, scratch_operands = 0 : i64, tpu.core_type = #tpu.core_type<tc>, window_params = [{transform_indices = @transform_0, window_bounds = array<i64: 1, 128, 128>}, {transform_indices = @transform_1, window_bounds = array<i64: 1, 3, 128>}, {transform_indices = @transform_2, window_bounds = array<i64: 1, 1, 3, 128>}]} {
    %c0_i32 = arith.constant 0 : i32
    %0 = arith.cmpi eq, %arg2, %c0_i32 : i32
    %1 = arith.extui %0 : i1 to i32
    %c0_i32_0 = arith.constant 0 : i32
    %2 = arith.cmpi ne, %1, %c0_i32_0 : i32
    scf.if %2 {
      %cst_14 = arith.constant 0.000000e+00 : f32
      %12 = vector.broadcast %cst_14 : f32 to vector<1x1x3x128xf32>
      %c0_15 = arith.constant 0 : index
      %c0_16 = arith.constant 0 : index
      %c0_17 = arith.constant 0 : index
      %c0_18 = arith.constant 0 : index
      %13 = vector.load %arg5[%c0_15, %c0_16, %c0_17, %c0_18] : memref<1x1x3x128xf32, #tpu.memory_space<vmem>>, vector<1x1x3x128xf32>
      tpu.vector_store %arg5[%c0_15, %c0_16, %c0_17, %c0_18], %12 {strides = array<i32>} : memref<1x1x3x128xf32, #tpu.memory_space<vmem>>, vector<1x1x3x128xf32>,
    } else {
    }
    %c0 = arith.constant 0 : index
    %c0_1 = arith.constant 0 : index
    %c0_2 = arith.constant 0 : index
    %c0_3 = arith.constant 0 : index
    %3 = vector.load %arg5[%c0, %c0_1, %c0_2, %c0_3] : memref<1x1x3x128xf32, #tpu.memory_space<vmem>>, vector<1x1x3x128xf32>
    %c0_4 = arith.constant 0 : index
    %c0_5 = arith.constant 0 : index
    %c0_6 = arith.constant 0 : index
    %4 = vector.load %arg4[%c0_4, %c0_5, %c0_6] : memref<1x3x128xbf16, #tpu.memory_space<vmem>>, vector<1x3x128xbf16>
    %5 = vector.shape_cast %4 : vector<1x3x128xbf16> to vector<3x128xbf16>
    %c0_7 = arith.constant 0 : index
    %c0_8 = arith.constant 0 : index
    %c0_9 = arith.constant 0 : index
    %6 = vector.load %arg3[%c0_7, %c0_8, %c0_9] : memref<1x128x128xbf16, #tpu.memory_space<vmem>>, vector<1x128x128xbf16>
    %7 = vector.shape_cast %6 : vector<1x128x128xbf16> to vector<128x128xbf16>
    %cst = arith.constant dense<0.000000e+00> : vector<3x128xf32>
    %8 = tpu.matmul %5, %7, %cst {dimension_numbers = #tpu.dot_dimension_numbers<[1], [0], [0], [1], [0, 0, 1, 1], [], []>} : vector<3x128xbf16>, vector<128x128xbf16>, vector<3x128xf32> -> vector<3x128xf32>
    %9 = vector.shape_cast %8 : vector<3x128xf32> to vector<1x1x3x128xf32>
    %10 = arith.addf %3, %9 : vector<1x1x3x128xf32>
    %c0_10 = arith.constant 0 : index
    %c0_11 = arith.constant 0 : index
    %c0_12 = arith.constant 0 : index
    %c0_13 = arith.constant 0 : index
    %11 = vector.load %arg5[%c0_10, %c0_11, %c0_12, %c0_13] : memref<1x1x3x128xf32, #tpu.memory_space<vmem>>, vector<1x1x3x128xf32>
    tpu.vector_store %arg5[%c0_10, %c0_11, %c0_12, %c0_13], %10 {strides = array<i32>} : memref<1x1x3x128xf32, #tpu.memory_space<vmem>>, vector<1x1x3x128xf32>,
    return
  }
  func.func @transform_0(%arg0: i32, %arg1: i32, %arg2: i32) -> (i32, i32, i32) {
    %c2_i32 = arith.constant 2 : i32
    %0 = arith.muli %arg1, %c2_i32 : i32
    %1 = arith.addi %0, %arg2 : i32
    %c0_i32 = arith.constant 0 : i32
    %c0_i32_0 = arith.constant 0 : i32
    return %arg0, %1, %c0_i32 : i32, i32, i32
  }
  func.func @transform_1(%arg0: i32, %arg1: i32, %arg2: i32) -> (i32, i32, i32) {
    %c2_i32 = arith.constant 2 : i32
    %0 = arith.muli %arg1, %c2_i32 : i32
    %1 = arith.addi %0, %arg2 : i32
    %c0_i32 = arith.constant 0 : i32
    %c0_i32_0 = arith.constant 0 : i32
    return %arg0, %c0_i32, %1 : i32, i32, i32
  }
  func.func @transform_2(%arg0: i32, %arg1: i32, %arg2: i32) -> (i32, i32, i32, i32) {
    %c0_i32 = arith.constant 0 : i32
    %c0_i32_0 = arith.constant 0 : i32
    %c0_i32_1 = arith.constant 0 : i32
    return %arg0, %arg1, %c0_i32, %c0_i32_0 : i32, i32, i32, i32
  }
}

</mosaic_0001>

<llo_original>
// kernel: _lambda_.2
$region0: #{_lambda_.2}
  #allocation0 [shape = 'u32[]', space=smem, size = 0x4, offset = 0x4, fixed_abs, tag = 'smem constant byte address 0x4 - core index']
  #allocation1 [shape = 'u32[144,128]{1,0:T(1,128)}', space=vmem, size = 0x12000, scoped, tag = 'internal scratch']
  %s0 = inlined_call_operand.vmem [shape: f32[2,8,512], index: 0, kind: input, shape index: {}]
  %s1 = inlined_call_operand.hbm [shape: bf16[8,128], index: 1, kind: input, shape index: {}]
  %s2 = inlined_call_operand.hbm [shape: f32[1,128], index: 2, kind: input, shape index: {}]
  %s3 = inlined_call_operand.hbm [shape: f32[1,128], index: 3, kind: input, shape index: {}]
  %s4 = inlined_call_operand.vmem [shape: bf16[2,512,128], index: 4, kind: output, shape index: {}]
  %s5 = sld [smem:[#allocation0]]
  $region61: #{_lambda_.2} parent=0
    _
  %s7 = ssub.s32 1, %s5
  %s8 = scalar_select 0, %s7, %s5
  $region1: #{_lambda_.2} parent=0
    #allocation2 [shape = 'u8[2048]{0}', space=vmem, size = 0x800, scoped, tag = 'input window, operand 1, single buffered']
    #allocation3 [shape = 's32[2]{0}', space=sflag, size = 0x8, scoped, tag = 'scoped memory for _lambda_.2']
    #allocation4 [shape = 'u8[512]{0}', space=vmem, size = 0x400, scoped, tag = 'input window, operand 2, single buffered']
    #allocation5 [shape = 's32[1]{0}', space=sflag, size = 0x4, scoped, tag = 'scoped memory for _lambda_.2']
    #allocation6 [shape = 'u8[512]{0}', space=vmem, size = 0x400, scoped, tag = 'input window, operand 3, single buffered']
    %9 = vsyncpa [#allocation3], 0
    %10 = vsyncpa [#allocation5], 0
    loop: start=0, step=1, limit=10
    $region2: #{_lambda_.2} parent=1 // loop_pre_header
      _
    $region3: #{_lambda_.2} parent=1 // loop_header
      %s12 = sphi 0, %s16
      %p13 = scmp.ge.s32.totalorder %s12, 10
      %s19 = sphi 0, %s31
      %s20 = sphi 0, %s27
      %s21 = sphi 0, %s19
      %s22 = sphi 0, %s20
      %s23 = sphi 0, %s21
      %s24 = sphi 0, %s22
      %s36 = sphi 0, %s38
      %s39 = sphi 0, %s36
      %s40 = sphi 0, %s39
      %s56 = sphi 0, %s40
      %s60 = sphi 0, %s60
      %s62 = sphi 0, %s60
      %s63 = sphi 0, %s62
      %s77 = sphi 0, %s63
      %s81 = sphi 0, %s81
      %s83 = sphi 0, %s81
      %s84 = sphi 0, %s83
      %s98 = sphi 0, %s84
      %s102 = sphi 0, %s102
      %s104 = sphi 0, %s102
      %s105 = sphi 0, %s104
      %s119 = sphi 0, %s105
      %s127 = sphi 0, %s129
      %s130 = sphi 0, %s127
      %s131 = sphi 0, %s130
      %s147 = sphi 0, %s131
    $region4: #{_lambda_.2} parent=1 // loop_header_branch
      %15 = sbr.rel (%p13) target = $region8
    $region5: #{_lambda_.2} parent=1 // loop_body
      %s17 = ssub.s32 %s12, 1
      %s18 = ssub.s32 %s12, 2
      %s25 = sadd.s32 1, %s20
      %p26 = scmp.ge.s32.totalorder %s25, 4
      %s27 = scalar_select %p26, 0, %s25
      %s28 = sadd.s32 1, %s19
      %s29 = scalar_select %p26, %s28, %s19
      %p30 = scmp.ge.s32.totalorder %s29, 2
      %s31 = scalar_select %p30, 0, %s29
      %s32 = ssub.s32 %s19, %s31
      %s33 = ssub.s32 %s20, %s27
      %s34 = sor.u32 %s32, %s33
      %p35 = scmp.eq.s32.totalorder %s34, 0
      %s37 = sadd.s32 %s36, 1
      %s38 = scalar_select %p35, %s36, %s37
      %p41 = pneg %p35
      %p42 = scmp.eq.s32.totalorder %s12, 7
      %p43 = por %p41, %p42
      %p44 = scmp.ne.s32.totalorder %s36, %s39
      %p45 = scmp.eq.s32.totalorder %s12, 0
      %p46 = por %p44, %p45
      %p47 = scmp.ne.s32.totalorder %s36, %s39
      %p48 = scmp.eq.s32.totalorder %s17, 7
      %p49 = por %p47, %p48
      %p50 = scmp.ne.s32.totalorder %s39, %s40
      %p51 = scmp.eq.s32.totalorder %s17, 0
      %p52 = por %p50, %p51
      %p53 = scmp.ne.s32.totalorder %s39, %s40
      %p54 = scmp.eq.s32.totalorder %s18, 7
      %p55 = por %p53, %p54
      %p57 = scmp.ne.s32.totalorder %s40, %s56
      %p58 = scmp.eq.s32.totalorder %s18, 0
      %p59 = por %p57, %p58
      %s61 = sadd.s32 %s60, 1
      %p64 = scmp.eq.s32.totalorder %s12, 7
      %p65 = scmp.ne.s32.totalorder %s60, %s62
      %p66 = scmp.eq.s32.totalorder %s12, 0
      %p67 = por %p65, %p66
      %p68 = scmp.ne.s32.totalorder %s60, %s62
      %p69 = scmp.eq.s32.totalorder %s17, 7
      %p70 = por %p68, %p69
      %p71 = scmp.ne.s32.totalorder %s62, %s63
      %p72 = scmp.eq.s32.totalorder %s17, 0
      %p73 = por %p71, %p72
      %p74 = scmp.ne.s32.totalorder %s62, %s63
      %p75 = scmp.eq.s32.totalorder %s18, 7
      %p76 = por %p74, %p75
      %p78 = scmp.ne.s32.totalorder %s63, %s77
      %p79 = scmp.eq.s32.totalorder %s18, 0
      %p80 = por %p78, %p79
      %s82 = sadd.s32 %s81, 1
      %p85 = scmp.eq.s32.totalorder %s12, 7
      %p86 = scmp.ne.s32.totalorder %s81, %s83
      %p87 = scmp.eq.s32.totalorder %s12, 0
      %p88 = por %p86, %p87
      %p89 = scmp.ne.s32.totalorder %s81, %s83
      %p90 = scmp.eq.s32.totalorder %s17, 7
      %p91 = por %p89, %p90
      %p92 = scmp.ne.s32.totalorder %s83, %s84
      %p93 = scmp.eq.s32.totalorder %s17, 0
      %p94 = por %p92, %p93
      %p95 = scmp.ne.s32.totalorder %s83, %s84
      %p96 = scmp.eq.s32.totalorder %s18, 7
      %p97 = por %p95, %p96
      %p99 = scmp.ne.s32.totalorder %s84, %s98
      %p100 = scmp.eq.s32.totalorder %s18, 0
      %p101 = por %p99, %p100
      %s103 = sadd.s32 %s102, 1
      %p106 = scmp.eq.s32.totalorder %s12, 7
      %p107 = scmp.ne.s32.totalorder %s102, %s104
      %p108 = scmp.eq.s32.totalorder %s12, 0
      %p109 = por %p107, %p108
      %p110 = scmp.ne.s32.totalorder %s102, %s104
      %p111 = scmp.eq.s32.totalorder %s17, 7
      %p112 = por %p110, %p111
      %p113 = scmp.ne.s32.totalorder %s104, %s105
      %p114 = scmp.eq.s32.totalorder %s17, 0
      %p115 = por %p113, %p114
      %p116 = scmp.ne.s32.totalorder %s104, %s105
      %p117 = scmp.eq.s32.totalorder %s18, 7
      %p118 = por %p116, %p117
      %p120 = scmp.ne.s32.totalorder %s105, %s119
      %p121 = scmp.eq.s32.totalorder %s18, 0
      %p122 = por %p120, %p121
      %s123 = ssub.s32 %s19, %s31
      %s124 = ssub.s32 %s20, %s27
      %s125 = sor.u32 %s123, %s124
      %p126 = scmp.eq.s32.totalorder %s125, 0
      %s128 = sadd.s32 %s127, 1
      %s129 = scalar_select %p126, %s127, %s128
      %p132 = pneg %p126
      %p133 = scmp.eq.s32.totalorder %s12, 7
      %p134 = por %p132, %p133
      %p135 = scmp.ne.s32.totalorder %s127, %s130
      %p136 = scmp.eq.s32.totalorder %s12, 0
      %p137 = por %p135, %p136
      %p138 = scmp.ne.s32.totalorder %s127, %s130
      %p139 = scmp.eq.s32.totalorder %s17, 7
      %p140 = por %p138, %p139
      %p141 = scmp.ne.s32.totalorder %s130, %s131
      %p142 = scmp.eq.s32.totalorder %s17, 0
      %p143 = por %p141, %p142
      %p144 = scmp.ne.s32.totalorder %s130, %s131
      %p145 = scmp.eq.s32.totalorder %s18, 7
      %p146 = por %p144, %p145
      %p148 = scmp.ne.s32.totalorder %s131, %s147
      %p149 = scmp.eq.s32.totalorder %s18, 0
      %p150 = por %p148, %p149
      %p151 = scmp.le.s32.totalorder 1, %s12
      %p152 = scmp.lt.s32.totalorder %s12, 9
      %p153 = pnand %p151, %p152
      %p154 = pneg %p153
      // Predicated region
      $region9: #{_lambda_.2} parent=5 // pred_check
        _
      $region10: #{_lambda_.2} parent=5 // pred_check_branch
        %156 = sbr.rel (%p153) target = $region12
      $region11: #{_lambda_.2} parent=5 // pred_region
        %s157 = ssub.s32 %s12, 1
        // Predicated region
        $region13: #{_lambda_.2} parent=11 // pred_check
          %p158 = pneg %p73
        $region14: #{_lambda_.2} parent=11 // pred_check_branch
          %160 = sbr.rel (%p158) target = $region16
        $region15: #{_lambda_.2} parent=11 // pred_region
          %s162 = ssub.s32 64, 64
          %163 = vsyncadd [#allocation3], %s162
          %s165 = sshll.u32 [#allocation2], 4
          %s166 = int_to_ptr.vmem [resolvable:$true] %s165
          %168 = dma.hbm_to_vmem [thread:$0]  %s1, 64, %s166, [#allocation3]
        $region16: #{_lambda_.2} parent=11 // pred_fallthru
          _
        // Predicated region
        $region17: #{_lambda_.2} parent=11 // pred_check
          %p169 = pneg %p94
        $region18: #{_lambda_.2} parent=11 // pred_check_branch
          %171 = sbr.rel (%p169) target = $region20
        $region19: #{_lambda_.2} parent=11 // pred_region
          %s173 = ssub.s32 16, 16
          %174 = vsyncadd [#allocation5], %s173
          %s176 = sshll.u32 [#allocation4], 4
          %s177 = int_to_ptr.vmem [resolvable:$true] %s176
          %179 = dma.hbm_to_vmem [thread:$0]  %s2, 16, %s177, [#allocation5]
        $region20: #{_lambda_.2} parent=11 // pred_fallthru
          _
        // Predicated region
        $region21: #{_lambda_.2} parent=11 // pred_check
          %p180 = pneg %p115
        $region22: #{_lambda_.2} parent=11 // pred_check_branch
          %182 = sbr.rel (%p180) target = $region24
        $region23: #{_lambda_.2} parent=11 // pred_region
          %s184 = ssub.s32 16, 16
          %185 = vsyncadd [#allocation5], %s184
          %s187 = sshll.u32 [#allocation6], 4
          %s188 = int_to_ptr.vmem [resolvable:$true] %s187
          %190 = dma.hbm_to_vmem [thread:$0]  %s3, 16, %s188, [#allocation5]
        $region24: #{_lambda_.2} parent=11 // pred_fallthru
          _
      $region12: #{_lambda_.2} parent=5 // pred_fallthru
        _
      %p191 = scmp.lt.s32.totalorder %s12, 8
      // Predicated region
      $region25: #{_lambda_.2} parent=5 // pred_check
        %p192 = pneg %p191
      $region26: #{_lambda_.2} parent=5 // pred_check_branch
        %194 = sbr.rel (%p192) target = $region28
      $region27: #{_lambda_.2} parent=5 // pred_region
        // Predicated region
        $region29: #{_lambda_.2} parent=27 // pred_check
          %p195 = pneg %p46
        $region30: #{_lambda_.2} parent=27 // pred_check_branch
          %197 = sbr.rel (%p195) target = $region32
        $region31: #{_lambda_.2} parent=27 // pred_region
          %p198 = scmp.lt.s32.totalorder %s19, 1
          %s199 = scalar_select %p198, %s19, 1
          %p200 = scmp.lt.s32.totalorder %s20, 3
          %s201 = scalar_select %p200, %s20, 3
          %s202 = smul.addr %s199, 4
          %s203 = sadd.s32 %s201, %s202
          %s204 = smul.addr %s203, 8
          %s205 = scalar_lea.vmem %s0, %s204
        $region32: #{_lambda_.2} parent=27 // pred_fallthru
          _
      $region28: #{_lambda_.2} parent=5 // pred_fallthru
        _
      %p206 = scmp.le.s32.totalorder 1, %s12
      %p207 = scmp.lt.s32.totalorder %s12, 9
      %p208 = pnand %p206, %p207
      %p209 = pneg %p208
      // Predicated region
      $region33: #{_lambda_.2} parent=5 // pred_check
        _
      $region34: #{_lambda_.2} parent=5 // pred_check_branch
        %211 = sbr.rel (%p208) target = $region36
      $region35: #{_lambda_.2} parent=5 // pred_region
        %s212 = ssub.s32 %s12, 1
        // Predicated region
        $region37: #{_lambda_.2} parent=35 // pred_check
          %p213 = pneg %p73
        $region38: #{_lambda_.2} parent=35 // pred_check_branch
          %215 = sbr.rel (%p213) target = $region40
        $region39: #{_lambda_.2} parent=35 // pred_region
          %216 = dma.done [#allocation3], 64
        $region40: #{_lambda_.2} parent=35 // pred_fallthru
          _
        // Predicated region
        $region41: #{_lambda_.2} parent=35 // pred_check
          %p217 = pneg %p94
        $region42: #{_lambda_.2} parent=35 // pred_check_branch
          %219 = sbr.rel (%p217) target = $region44
        $region43: #{_lambda_.2} parent=35 // pred_region
          %220 = dma.done [#allocation5], 16
        $region44: #{_lambda_.2} parent=35 // pred_fallthru
          _
        // Predicated region
        $region45: #{_lambda_.2} parent=35 // pred_check
          %p221 = pneg %p115
        $region46: #{_lambda_.2} parent=35 // pred_check_branch
          %223 = sbr.rel (%p221) target = $region48
        $region47: #{_lambda_.2} parent=35 // pred_region
          %224 = dma.done [#allocation5], 16
        $region48: #{_lambda_.2} parent=35 // pred_fallthru
          _
        %p225 = scmp.lt.s32.totalorder %s21, 1
        %s226 = scalar_select %p225, %s21, 1
        %p227 = scmp.lt.s32.totalorder %s22, 3
        %s228 = scalar_select %p227, %s22, 3
        %s229 = smul.addr %s226, 4
        %s230 = sadd.s32 %s228, %s229
        %s231 = smul.addr %s230, 8
        %s232 = scalar_lea.vmem %s0, %s231
        %p233 = pneg %p52
        %p234 = pneg %p49
        %p235 = pneg %p73
        %p236 = pneg %p70
        %p237 = pneg %p94
        %p238 = pneg %p91
        %p239 = pneg %p115
        %p240 = pneg %p112
        %p241 = pneg %p143
        %p242 = pneg %p140
        %s243 = smul.u32 16, %s22
        %p244 = scmp.lt.s32.totalorder %s21, 1
        %s245 = scalar_select %p244, %s21, 1
        %p246 = scmp.lt.s32.totalorder %s243, 63
        %s247 = scalar_select %p246, %s243, 63
        %s248 = smul.addr %s245, 64
        %s249 = sadd.s32 %s247, %s248
        %s250 = smul.addr %s249, 4
        %s251 = scalar_lea.vmem %s4, %s250
        %p252 = scmp.lt.s32.totalorder %s21, 1
        %s253 = scalar_select %p252, %s21, 1
        %p254 = scmp.lt.s32.totalorder %s22, 3
        %s255 = scalar_select %p254, %s22, 3
        %s256 = smul.addr %s253, 4
        %s257 = sadd.s32 %s255, %s256
        %s258 = smul.addr %s257, 8
        %s259 = scalar_lea.vmem %s0, %s258
        %s260 = smul.u32 16, %s22
        %p261 = scmp.lt.s32.totalorder %s21, 1
        %s262 = scalar_select %p261, %s21, 1
        %p263 = scmp.lt.s32.totalorder %s260, 63
        %s264 = scalar_select %p263, %s260, 63
        %s265 = smul.addr %s262, 64
        %s266 = sadd.s32 %s264, %s265
        %s267 = smul.addr %s266, 4
        %s268 = scalar_lea.vmem %s4, %s267
        %s269 = smul.u32 16, %s22
        %v271 = vld [vmem:[%s259] sm:$0xff]
        %v272 = vpack.c.bf16 %v271, %v271
        %v273 = vld [vmem:[#allocation2] sm:$0xf]
        %v274 = vld [vmem:[#allocation4] sm:$0x1]
        %v276 = vlaneseq
        %v277 = vshrl.u32 %v276, 7
        %v278 = vsub.s32 0, %v277
        %v279 = vrot.slane %v274, %v278
        %281 = vxpose.xlu0.c.b16.start [1/8] %v272, 128
        %282 = vxpose.xlu0.c.b16.cont [2/8] 0, 128
        %283 = vxpose.xlu0.c.b16.cont [3/8] 0, 128
        %284 = vxpose.xlu0.c.b16.cont [4/8] 0, 128
        %285 = vxpose.xlu0.c.b16.cont [5/8] 0, 128
        %286 = vxpose.xlu0.c.b16.cont [6/8] 0, 128
        %287 = vxpose.xlu0.c.b16.cont [7/8] 0, 128
        %288 = vxpose.xlu0.c.b16.end [8/8] 0, 128
        %v289 = vpop.trf.xlu0
        %v290 = vpop.trf.xlu0
        %v291 = vpop.trf.xlu0
        %v292 = vpop.trf.xlu0
        %v293 = vpop.trf.xlu0
        %v294 = vpop.trf.xlu0
        %v295 = vpop.trf.xlu0
        %v296 = vpop.trf.xlu0
        %vm297 = vcmask 64512
        %v299 = vsel %vm297, %v289, 0
        %v302 = vsel %vm297, %v290, 0
        %v305 = vsel %vm297, %v291, 0
        %v308 = vsel %vm297, %v292, 0
        %v311 = vsel %vm297, %v293, 0
        %v314 = vsel %vm297, %v294, 0
        %v317 = vsel %vm297, %v295, 0
        %v320 = vsel %vm297, %v296, 0
        %vm322 = vcmask 1043456
        %v324 = vsel %vm322, %v273, 0
        %326 = vmatprep.subr.bf16.mxu0 0
        %327 = vmatpush1.bf16.msra.mxu0 %v324
        %328 = vmatprep.subr.bf16.mxu0 0
        %329 = vmatpush1.bf16.msra.mxu0 0
        %330 = vmatprep.subr.bf16.mxu0 0
        %331 = vmatpush1.bf16.msra.mxu0 0
        %332 = vmatprep.subr.bf16.mxu0 0
        %333 = vmatpush1.bf16.msra.mxu0 0
        %334 = vmatprep.subr.bf16.mxu0 0
        %335 = vmatpush1.bf16.msra.mxu0 0
        %336 = vmatprep.subr.bf16.mxu0 0
        %337 = vmatpush1.bf16.msra.mxu0 0
        %338 = vmatprep.subr.bf16.mxu0 0
        %339 = vmatpush1.bf16.msra.mxu0 0
        %340 = vmatprep.subr.bf16.mxu0 0
        %341 = vmatpush1.bf16.msra.mxu0 0
        %342 = vmatprep.subr.bf16.mxu0 0
        %343 = vmatpush1.bf16.msra.mxu0 0
        %344 = vmatprep.subr.bf16.mxu0 0
        %345 = vmatpush1.bf16.msra.mxu0 0
        %346 = vmatprep.subr.bf16.mxu0 0
        %347 = vmatpush1.bf16.msra.mxu0 0
        %348 = vmatprep.subr.bf16.mxu0 0
        %349 = vmatpush1.bf16.msra.mxu0 0
        %350 = vmatprep.subr.bf16.mxu0 0
        %351 = vmatpush1.bf16.msra.mxu0 0
        %352 = vmatprep.subr.bf16.mxu0 0
        %353 = vmatpush1.bf16.msra.mxu0 0
        %354 = vmatprep.subr.bf16.mxu0 0
        %355 = vmatpush1.bf16.msra.mxu0 0
        %356 = vmatprep.subr.bf16.mxu0 0
        %357 = vmatpush1.bf16.msra.mxu0 0
        %358 = vmatprep.mubr.bf16.mxu0 0
        %359 = vmatmul.mubr.bf16.gmra.mrb[0].mxu0 %v299
        %v360 = vpop.f32.mrb[0].mxu0
        %v361 = vadd.f32 %v279, %v360
        %v362 = vpop.f32.mrb[0].mxu0
        %v363 = vpop.f32.mrb[0].mxu0
        %v364 = vadd.f32 %v279, %v363
        %v365 = vpop.f32.mrb[0].mxu0
        %366 = vmatprep.mubr.bf16.mxu0 0
        %367 = vmatmul.mubr.bf16.gmra.mrb[0].mxu0 %v302
        %v368 = vpop.f32.mrb[0].mxu0
        %v369 = vadd.f32 %v279, %v368
        %v370 = vpop.f32.mrb[0].mxu0
        %v371 = vpop.f32.mrb[0].mxu0
        %v372 = vadd.f32 %v279, %v371
        %v373 = vpop.f32.mrb[0].mxu0
        %374 = vmatprep.mubr.bf16.mxu0 0
        %375 = vmatmul.mubr.bf16.gmra.mrb[0].mxu0 %v305
        %v376 = vpop.f32.mrb[0].mxu0
        %v377 = vadd.f32 %v279, %v376
        %v378 = vpop.f32.mrb[0].mxu0
        %v379 = vpop.f32.mrb[0].mxu0
        %v380 = vadd.f32 %v279, %v379
        %v381 = vpop.f32.mrb[0].mxu0
        %382 = vmatprep.mubr.bf16.mxu0 0
        %383 = vmatmul.mubr.bf16.gmra.mrb[0].mxu0 %v308
        %v384 = vpop.f32.mrb[0].mxu0
        %v385 = vadd.f32 %v279, %v384
        %v386 = vpop.f32.mrb[0].mxu0
        %v387 = vpop.f32.mrb[0].mxu0
        %v388 = vadd.f32 %v279, %v387
        %v389 = vpop.f32.mrb[0].mxu0
        %390 = vmatprep.mubr.bf16.mxu0 0
        %391 = vmatmul.mubr.bf16.gmra.mrb[0].mxu0 %v311
        %v392 = vpop.f32.mrb[0].mxu0
        %v393 = vadd.f32 %v279, %v392
        %v394 = vpop.f32.mrb[0].mxu0
        %v395 = vpop.f32.mrb[0].mxu0
        %v396 = vadd.f32 %v279, %v395
        %v397 = vpop.f32.mrb[0].mxu0
        %398 = vmatprep.mubr.bf16.mxu0 0
        %399 = vmatmul.mubr.bf16.gmra.mrb[0].mxu0 %v314
        %v400 = vpop.f32.mrb[0].mxu0
        %v401 = vadd.f32 %v279, %v400
        %v402 = vpop.f32.mrb[0].mxu0
        %v403 = vpop.f32.mrb[0].mxu0
        %v404 = vadd.f32 %v279, %v403
        %v405 = vpop.f32.mrb[0].mxu0
        %406 = vmatprep.mubr.bf16.mxu0 0
        %407 = vmatmul.mubr.bf16.gmra.mrb[0].mxu0 %v317
        %v408 = vpop.f32.mrb[0].mxu0
        %v409 = vadd.f32 %v279, %v408
        %v410 = vpop.f32.mrb[0].mxu0
        %v411 = vpop.f32.mrb[0].mxu0
        %v412 = vadd.f32 %v279, %v411
        %v413 = vpop.f32.mrb[0].mxu0
        %414 = vmatprep.mubr.bf16.mxu0 0
        %415 = vmatmul.mubr.bf16.gmra.mrb[0].mxu0 %v320
        %v416 = vpop.f32.mrb[0].mxu0
        %v417 = vadd.f32 %v279, %v416
        %v418 = vpop.f32.mrb[0].mxu0
        %v419 = vpop.f32.mrb[0].mxu0
        %v420 = vadd.f32 %v279, %v419
        %v421 = vpop.f32.mrb[0].mxu0
        %422 = vdwg.mxu0
        %v423 = vsub.f32 0.0, %v361
        %v424 = vsub.f32 0.0, %v364
        %v425 = vsub.f32 0.0, %v369
        %v426 = vsub.f32 0.0, %v372
        %v427 = vsub.f32 0.0, %v377
        %v428 = vsub.f32 0.0, %v380
        %v429 = vsub.f32 0.0, %v385
        %v430 = vsub.f32 0.0, %v388
        %v431 = vsub.f32 0.0, %v393
        %v432 = vsub.f32 0.0, %v396
        %v433 = vsub.f32 0.0, %v401
        %v434 = vsub.f32 0.0, %v404
        %v435 = vsub.f32 0.0, %v409
        %v436 = vsub.f32 0.0, %v412
        %v437 = vsub.f32 0.0, %v417
        %v438 = vsub.f32 0.0, %v420
        %v439 = vmul.f32 %v423, 1.442695
        %v440 = vpow.pop %v439
        %v441 = vmul.f32 %v424, 1.442695
        %v442 = vpow.pop %v441
        %v443 = vmul.f32 %v425, 1.442695
        %v444 = vpow.pop %v443
        %v445 = vmul.f32 %v426, 1.442695
        %v446 = vpow.pop %v445
        %v447 = vmul.f32 %v427, 1.442695
        %v448 = vpow.pop %v447
        %v449 = vmul.f32 %v428, 1.442695
        %v450 = vpow.pop %v449
        %v451 = vmul.f32 %v429, 1.442695
        %v452 = vpow.pop %v451
        %v453 = vmul.f32 %v430, 1.442695
        %v454 = vpow.pop %v453
        %v455 = vmul.f32 %v431, 1.442695
        %v456 = vpow.pop %v455
        %v457 = vmul.f32 %v432, 1.442695
        %v458 = vpow.pop %v457
        %v459 = vmul.f32 %v433, 1.442695
        %v460 = vpow.pop %v459
        %v461 = vmul.f32 %v434, 1.442695
        %v462 = vpow.pop %v461
        %v463 = vmul.f32 %v435, 1.442695
        %v464 = vpow.pop %v463
        %v465 = vmul.f32 %v436, 1.442695
        %v466 = vpow.pop %v465
        %v467 = vmul.f32 %v437, 1.442695
        %v468 = vpow.pop %v467
        %v469 = vmul.f32 %v438, 1.442695
        %v470 = vpow.pop %v469
        %v471 = vadd.f32 %v440, 1.0
        %v472 = vadd.f32 %v442, 1.0
        %v473 = vadd.f32 %v444, 1.0
        %v474 = vadd.f32 %v446, 1.0
        %v475 = vadd.f32 %v448, 1.0
        %v476 = vadd.f32 %v450, 1.0
        %v477 = vadd.f32 %v452, 1.0
        %v478 = vadd.f32 %v454, 1.0
        %v479 = vadd.f32 %v456, 1.0
        %v480 = vadd.f32 %v458, 1.0
        %v481 = vadd.f32 %v460, 1.0
        %v482 = vadd.f32 %v462, 1.0
        %v483 = vadd.f32 %v464, 1.0
        %v484 = vadd.f32 %v466, 1.0
        %v485 = vadd.f32 %v468, 1.0
        %v486 = vadd.f32 %v470, 1.0
        %v487 = vrcp.pop %v471
        %v488 = vrcp.pop %v472
        %v489 = vrcp.pop %v473
        %v490 = vrcp.pop %v474
        %v491 = vrcp.pop %v475
        %v492 = vrcp.pop %v476
        %v493 = vrcp.pop %v477
        %v494 = vrcp.pop %v478
        %v495 = vrcp.pop %v479
        %v496 = vrcp.pop %v480
        %v497 = vrcp.pop %v481
        %v498 = vrcp.pop %v482
        %v499 = vrcp.pop %v483
        %v500 = vrcp.pop %v484
        %v501 = vrcp.pop %v485
        %v502 = vrcp.pop %v486
        %v503 = vld [vmem:[#allocation6] sm:$0x1]
        %v505 = vlaneseq
        %v506 = vshrl.u32 %v505, 7
        %v507 = vsub.s32 0, %v506
        %v508 = vrot.slane %v503, %v507
        %v510 = vmul.f32 %v487, %v508
        %v511 = vmul.f32 %v488, %v508
        %v512 = vmul.f32 %v489, %v508
        %v513 = vmul.f32 %v490, %v508
        %v514 = vmul.f32 %v491, %v508
        %v515 = vmul.f32 %v492, %v508
        %v516 = vmul.f32 %v493, %v508
        %v517 = vmul.f32 %v494, %v508
        %v518 = vmul.f32 %v495, %v508
        %v519 = vmul.f32 %v496, %v508
        %v520 = vmul.f32 %v497, %v508
        %v521 = vmul.f32 %v498, %v508
        %v522 = vmul.f32 %v499, %v508
        %v523 = vmul.f32 %v500, %v508
        %v524 = vmul.f32 %v501, %v508
        %v525 = vmul.f32 %v502, %v508
        %v526 = vpack.c.bf16 %v511, %v510
        %v527 = vpack.c.bf16 %v513, %v512
        %v528 = vpack.c.bf16 %v515, %v514
        %v529 = vpack.c.bf16 %v517, %v516
        %v530 = vpack.c.bf16 %v519, %v518
        %v531 = vpack.c.bf16 %v521, %v520
        %v532 = vpack.c.bf16 %v523, %v522
        %v533 = vpack.c.bf16 %v525, %v524
        %v542 = vunpack.c.l.b16 %v526
        %v543 = vunpack.c.h.b16 %v526
        %v544 = vunpack.c.l.b16 %v527
        %v545 = vunpack.c.h.b16 %v527
        %v546 = vunpack.c.l.b16 %v528
        %v547 = vunpack.c.h.b16 %v528
        %v548 = vunpack.c.l.b16 %v529
        %v549 = vunpack.c.h.b16 %v529
        %v550 = vunpack.c.l.b16 %v530
        %v551 = vunpack.c.h.b16 %v530
        %v552 = vunpack.c.l.b16 %v531
        %v553 = vunpack.c.h.b16 %v531
        %v554 = vunpack.c.l.b16 %v532
        %v555 = vunpack.c.h.b16 %v532
        %v556 = vunpack.c.l.b16 %v533
        %v557 = vunpack.c.h.b16 %v533
        %v558 = vpack.c.b16 %v542, %v542
        %v559 = vpack.c.b16 %v543, %v543
        %v560 = vpack.c.b16 %v544, %v544
        %v561 = vpack.c.b16 %v545, %v545
        %v562 = vpack.c.b16 %v546, %v546
        %v563 = vpack.c.b16 %v547, %v547
        %v564 = vpack.c.b16 %v548, %v548
        %v565 = vpack.c.b16 %v549, %v549
        %v566 = vpack.c.b16 %v550, %v550
        %v567 = vpack.c.b16 %v551, %v551
        %v568 = vpack.c.b16 %v552, %v552
        %v569 = vpack.c.b16 %v553, %v553
        %v570 = vpack.c.b16 %v554, %v554
        %v571 = vpack.c.b16 %v555, %v555
        %v572 = vpack.c.b16 %v556, %v556
        %v573 = vpack.c.b16 %v557, %v557
        %590 = vst [vmem:[%s268] sm:$0xf] %v558
        %591 = vst [vmem:[%s268 + $0x4] sm:$0xf] %v559
        %592 = vst [vmem:[%s268 + $0x8] sm:$0xf] %v560
        %593 = vst [vmem:[%s268 + $0xc] sm:$0xf] %v561
        %594 = vst [vmem:[%s268 + $0x10] sm:$0xf] %v562
        %595 = vst [vmem:[%s268 + $0x14] sm:$0xf] %v563
        %596 = vst [vmem:[%s268 + $0x18] sm:$0xf] %v564
        %597 = vst [vmem:[%s268 + $0x1c] sm:$0xf] %v565
        %598 = vst [vmem:[%s268 + $0x20] sm:$0xf] %v566
        %599 = vst [vmem:[%s268 + $0x24] sm:$0xf] %v567
        %600 = vst [vmem:[%s268 + $0x28] sm:$0xf] %v568
        %601 = vst [vmem:[%s268 + $0x2c] sm:$0xf] %v569
        %602 = vst [vmem:[%s268 + $0x30] sm:$0xf] %v570
        %603 = vst [vmem:[%s268 + $0x34] sm:$0xf] %v571
        %604 = vst [vmem:[%s268 + $0x38] sm:$0xf] %v572
        %605 = vst [vmem:[%s268 + $0x3c] sm:$0xf] %v573
        %s606 = smul.u32 16, %s22
        %p607 = scmp.lt.s32.totalorder %s21, 1
        %s608 = scalar_select %p607, %s21, 1
        %p609 = scmp.lt.s32.totalorder %s606, 63
        %s610 = scalar_select %p609, %s606, 63
        %s611 = smul.addr %s608, 64
        %s612 = sadd.s32 %s610, %s611
        %s613 = smul.addr %s612, 4
        %s614 = scalar_lea.vmem %s4, %s613
        // Predicated region
        $region49: #{_lambda_.2} parent=35 // pred_check
          %p615 = pneg %p140
        $region50: #{_lambda_.2} parent=35 // pred_check_branch
          %617 = sbr.rel (%p615) target = $region52
        $region51: #{_lambda_.2} parent=35 // pred_region
          %s618 = smul.u32 16, %s22
        $region52: #{_lambda_.2} parent=35 // pred_fallthru
          _
      $region36: #{_lambda_.2} parent=5 // pred_fallthru
        _
      %p619 = scmp.le.s32.totalorder 2, %s12
      // Predicated region
      $region53: #{_lambda_.2} parent=5 // pred_check
        %p620 = pneg %p619
      $region54: #{_lambda_.2} parent=5 // pred_check_branch
        %622 = sbr.rel (%p620) target = $region56
      $region55: #{_lambda_.2} parent=5 // pred_region
        %s623 = ssub.s32 %s12, 2
        // Predicated region
        $region57: #{_lambda_.2} parent=55 // pred_check
          %p624 = pneg %p146
        $region58: #{_lambda_.2} parent=55 // pred_check_branch
          %626 = sbr.rel (%p624) target = $region60
        $region59: #{_lambda_.2} parent=55 // pred_region
          %s627 = smul.u32 16, %s24
          %p628 = scmp.lt.s32.totalorder %s23, 1
          %s629 = scalar_select %p628, %s23, 1
          %p630 = scmp.lt.s32.totalorder %s627, 63
          %s631 = scalar_select %p630, %s627, 63
          %s632 = smul.addr %s629, 64
          %s633 = sadd.s32 %s631, %s632
          %s634 = smul.addr %s633, 4
          %s635 = scalar_lea.vmem %s4, %s634
        $region60: #{_lambda_.2} parent=55 // pred_fallthru
          _
      $region56: #{_lambda_.2} parent=5 // pred_fallthru
        _
    $region6: #{_lambda_.2} parent=1 // loop_footer
      %s16 = sadd.s32 1, %s12
    $region7: #{_lambda_.2} parent=1 // loop_footer_branch
      %11 = sbr.rel target = $region3
    $region8: #{_lambda_.2} parent=1 // loop_exit
      _
    %636 = vsyncpa [#allocation3], 1
    %s637 = scalar_lea.sflag [#allocation3], 1
    %638 = vsyncpa %s637, 1
    %639 = vsyncpa [#allocation5], 1

// kernel: custom-call.16
$region0: #{custom-call.16}
  %s0 = inlined_call_operand.hbm [shape: s32[2], index: 0, kind: output, shape index: {}]

// kernel: _lambda_.3
$region0: #{_lambda_.3}
  #allocation0 [shape = 'u32[]', space=smem, size = 0x4, offset = 0x4, fixed_abs, tag = 'smem constant byte address 0x4 - core index']
  #allocation1 [shape = 'u32[144,128]{1,0:T(1,128)}', space=vmem, size = 0x12000, scoped, tag = 'internal scratch']
  %s0 = inlined_call_operand.vmem [shape: bf16[2,512,128], index: 0, kind: input, shape index: {}]
  %s1 = inlined_call_operand.vmem [shape: bf16[2,3,512], index: 1, kind: input, shape index: {}]
  %s2 = inlined_call_operand.vmem [shape: f32[2,2,3,128], index: 2, kind: output, shape index: {}]
  %s3 = sld [smem:[#allocation0]]
  $region45: #{_lambda_.3} parent=0
    _
  %s5 = ssub.s32 1, %s3
  %s6 = scalar_select 0, %s5, %s3
  loop: start=0, step=1, limit=10
  $region2: #{_lambda_.3} parent=0 // loop_pre_header
    _
  $region3: #{_lambda_.3} parent=0 // loop_header
    %s8 = sphi 0, %s12
    %p9 = scmp.ge.s32.totalorder %s8, 10
    %s15 = sphi 0, %s34
    %s16 = sphi 0, %s30
    %s17 = sphi 0, %s26
    %s18 = sphi 0, %s15
    %s19 = sphi 0, %s16
    %s20 = sphi 0, %s17
    %s21 = sphi 0, %s18
    %s22 = sphi 0, %s19
    %s23 = sphi 0, %s20
    %s43 = sphi 0, %s45
    %s46 = sphi 0, %s43
    %s47 = sphi 0, %s46
    %s63 = sphi 0, %s47
    %s75 = sphi 0, %s77
    %s78 = sphi 0, %s75
    %s79 = sphi 0, %s78
    %s95 = sphi 0, %s79
    %s103 = sphi 0, %s105
    %s106 = sphi 0, %s103
    %s107 = sphi 0, %s106
    %s123 = sphi 0, %s107
  $region4: #{_lambda_.3} parent=0 // loop_header_branch
    %11 = sbr.rel (%p9) target = $region8
  $region5: #{_lambda_.3} parent=0 // loop_body
    %s13 = ssub.s32 %s8, 1
    %s14 = ssub.s32 %s8, 2
    %s24 = sadd.s32 1, %s17
    %p25 = scmp.ge.s32.totalorder %s24, 2
    %s26 = scalar_select %p25, 0, %s24
    %s27 = sadd.s32 1, %s16
    %s28 = scalar_select %p25, %s27, %s16
    %p29 = scmp.ge.s32.totalorder %s28, 2
    %s30 = scalar_select %p29, 0, %s28
    %s31 = sadd.s32 1, %s15
    %s32 = scalar_select %p29, %s31, %s15
    %p33 = scmp.ge.s32.totalorder %s32, 2
    %s34 = scalar_select %p33, 0, %s32
    %s35 = smul.u32 %s16, 2
    %s36 = sadd.s32 %s35, %s17
    %s37 = smul.u32 %s30, 2
    %s38 = sadd.s32 %s37, %s26
    %s39 = ssub.s32 %s15, %s34
    %s40 = ssub.s32 %s36, %s38
    %s41 = sor.u32 %s39, %s40
    %p42 = scmp.eq.s32.totalorder %s41, 0
    %s44 = sadd.s32 %s43, 1
    %s45 = scalar_select %p42, %s43, %s44
    %p48 = pneg %p42
    %p49 = scmp.eq.s32.totalorder %s8, 7
    %p50 = por %p48, %p49
    %p51 = scmp.ne.s32.totalorder %s43, %s46
    %p52 = scmp.eq.s32.totalorder %s8, 0
    %p53 = por %p51, %p52
    %p54 = scmp.ne.s32.totalorder %s43, %s46
    %p55 = scmp.eq.s32.totalorder %s13, 7
    %p56 = por %p54, %p55
    %p57 = scmp.ne.s32.totalorder %s46, %s47
    %p58 = scmp.eq.s32.totalorder %s13, 0
    %p59 = por %p57, %p58
    %p60 = scmp.ne.s32.totalorder %s46, %s47
    %p61 = scmp.eq.s32.totalorder %s14, 7
    %p62 = por %p60, %p61
    %p64 = scmp.ne.s32.totalorder %s47, %s63
    %p65 = scmp.eq.s32.totalorder %s14, 0
    %p66 = por %p64, %p65
    %s67 = smul.u32 %s16, 2
    %s68 = sadd.s32 %s67, %s17
    %s69 = smul.u32 %s30, 2
    %s70 = sadd.s32 %s69, %s26
    %s71 = ssub.s32 %s15, %s34
    %s72 = ssub.s32 %s68, %s70
    %s73 = sor.u32 %s71, %s72
    %p74 = scmp.eq.s32.totalorder %s73, 0
    %s76 = sadd.s32 %s75, 1
    %s77 = scalar_select %p74, %s75, %s76
    %p80 = pneg %p74
    %p81 = scmp.eq.s32.totalorder %s8, 7
    %p82 = por %p80, %p81
    %p83 = scmp.ne.s32.totalorder %s75, %s78
    %p84 = scmp.eq.s32.totalorder %s8, 0
    %p85 = por %p83, %p84
    %p86 = scmp.ne.s32.totalorder %s75, %s78
    %p87 = scmp.eq.s32.totalorder %s13, 7
    %p88 = por %p86, %p87
    %p89 = scmp.ne.s32.totalorder %s78, %s79
    %p90 = scmp.eq.s32.totalorder %s13, 0
    %p91 = por %p89, %p90
    %p92 = scmp.ne.s32.totalorder %s78, %s79
    %p93 = scmp.eq.s32.totalorder %s14, 7
    %p94 = por %p92, %p93
    %p96 = scmp.ne.s32.totalorder %s79, %s95
    %p97 = scmp.eq.s32.totalorder %s14, 0
    %p98 = por %p96, %p97
    %s99 = ssub.s32 %s15, %s34
    %s100 = ssub.s32 %s16, %s30
    %s101 = sor.u32 %s99, %s100
    %p102 = scmp.eq.s32.totalorder %s101, 0
    %s104 = sadd.s32 %s103, 1
    %s105 = scalar_select %p102, %s103, %s104
    %p108 = pneg %p102
    %p109 = scmp.eq.s32.totalorder %s8, 7
    %p110 = por %p108, %p109
    %p111 = scmp.ne.s32.totalorder %s103, %s106
    %p112 = scmp.eq.s32.totalorder %s8, 0
    %p113 = por %p111, %p112
    %p114 = scmp.ne.s32.totalorder %s103, %s106
    %p115 = scmp.eq.s32.totalorder %s13, 7
    %p116 = por %p114, %p115
    %p117 = scmp.ne.s32.totalorder %s106, %s107
    %p118 = scmp.eq.s32.totalorder %s13, 0
    %p119 = por %p117, %p118
    %p120 = scmp.ne.s32.totalorder %s106, %s107
    %p121 = scmp.eq.s32.totalorder %s14, 7
    %p122 = por %p120, %p121
    %p124 = scmp.ne.s32.totalorder %s107, %s123
    %p125 = scmp.eq.s32.totalorder %s14, 0
    %p126 = por %p124, %p125
    %p127 = scmp.le.s32.totalorder 1, %s8
    %p128 = scmp.lt.s32.totalorder %s8, 9
    %p129 = pnand %p127, %p128
    %p130 = pneg %p129
    // Predicated region
    $region9: #{_lambda_.3} parent=5 // pred_check
      _
    $region10: #{_lambda_.3} parent=5 // pred_check_branch
      %132 = sbr.rel (%p129) target = $region12
    $region11: #{_lambda_.3} parent=5 // pred_region
      %s133 = ssub.s32 %s8, 1
    $region12: #{_lambda_.3} parent=5 // pred_fallthru
      _
    %p134 = scmp.lt.s32.totalorder %s8, 8
    // Predicated region
    $region13: #{_lambda_.3} parent=5 // pred_check
      %p135 = pneg %p134
    $region14: #{_lambda_.3} parent=5 // pred_check_branch
      %137 = sbr.rel (%p135) target = $region16
    $region15: #{_lambda_.3} parent=5 // pred_region
      // Predicated region
      $region17: #{_lambda_.3} parent=15 // pred_check
        %p138 = pneg %p53
      $region18: #{_lambda_.3} parent=15 // pred_check_branch
        %140 = sbr.rel (%p138) target = $region20
      $region19: #{_lambda_.3} parent=15 // pred_region
        %s141 = smul.u32 %s16, 2
        %s142 = sadd.s32 %s141, %s17
        %s143 = smul.u32 16, %s142
        %p144 = scmp.lt.s32.totalorder %s15, 1
        %s145 = scalar_select %p144, %s15, 1
        %p146 = scmp.lt.s32.totalorder %s143, 63
        %s147 = scalar_select %p146, %s143, 63
        %s148 = smul.addr %s145, 64
        %s149 = sadd.s32 %s147, %s148
        %s150 = smul.addr %s149, 4
        %s151 = scalar_lea.vmem %s0, %s150
        %s152 = smul.u32 %s16, 2
        %s153 = sadd.s32 %s152, %s17
        %s154 = smul.u32 16, %s153
      $region20: #{_lambda_.3} parent=15 // pred_fallthru
        _
      // Predicated region
      $region21: #{_lambda_.3} parent=15 // pred_check
        %p155 = pneg %p85
      $region22: #{_lambda_.3} parent=15 // pred_check_branch
        %157 = sbr.rel (%p155) target = $region24
      $region23: #{_lambda_.3} parent=15 // pred_region
        %s158 = smul.u32 %s16, 2
        %s159 = sadd.s32 %s158, %s17
        %p160 = scmp.lt.s32.totalorder %s15, 1
        %s161 = scalar_select %p160, %s15, 1
        %p162 = scmp.lt.s32.totalorder %s159, 3
        %s163 = scalar_select %p162, %s159, 3
        %s164 = smul.addr %s161, 4
        %s165 = sadd.s32 %s163, %s164
        %s166 = smul.addr %s165, 2
        %s167 = scalar_lea.vmem %s1, %s166
        %s168 = smul.u32 %s16, 2
        %s169 = sadd.s32 %s168, %s17
      $region24: #{_lambda_.3} parent=15 // pred_fallthru
        _
    $region16: #{_lambda_.3} parent=5 // pred_fallthru
      _
    %p170 = scmp.le.s32.totalorder 1, %s8
    %p171 = scmp.lt.s32.totalorder %s8, 9
    %p172 = pnand %p170, %p171
    %p173 = pneg %p172
    // Predicated region
    $region25: #{_lambda_.3} parent=5 // pred_check
      _
    $region26: #{_lambda_.3} parent=5 // pred_check_branch
      %175 = sbr.rel (%p172) target = $region28
    $region27: #{_lambda_.3} parent=5 // pred_region
      %s176 = ssub.s32 %s8, 1
      %s177 = smul.u32 %s19, 2
      %s178 = sadd.s32 %s177, %s20
      %s179 = smul.u32 16, %s178
      %p180 = scmp.lt.s32.totalorder %s18, 1
      %s181 = scalar_select %p180, %s18, 1
      %p182 = scmp.lt.s32.totalorder %s179, 63
      %s183 = scalar_select %p182, %s179, 63
      %s184 = smul.addr %s181, 64
      %s185 = sadd.s32 %s183, %s184
      %s186 = smul.addr %s185, 4
      %s187 = scalar_lea.vmem %s0, %s186
      %p188 = pneg %p59
      %p189 = pneg %p56
      %s190 = smul.u32 %s19, 2
      %s191 = sadd.s32 %s190, %s20
      %p192 = scmp.lt.s32.totalorder %s18, 1
      %s193 = scalar_select %p192, %s18, 1
      %p194 = scmp.lt.s32.totalorder %s191, 3
      %s195 = scalar_select %p194, %s191, 3
      %s196 = smul.addr %s193, 4
      %s197 = sadd.s32 %s195, %s196
      %s198 = smul.addr %s197, 2
      %s199 = scalar_lea.vmem %s1, %s198
      %p200 = pneg %p91
      %p201 = pneg %p88
      %p202 = pneg %p119
      %p203 = pneg %p116
      %p204 = scmp.lt.s32.totalorder %s18, 1
      %s205 = scalar_select %p204, %s18, 1
      %p206 = scmp.lt.s32.totalorder %s19, 1
      %s207 = scalar_select %p206, %s19, 1
      %s208 = smul.addr %s205, 2
      %s209 = sadd.s32 %s207, %s208
      %s210 = smul.addr %s209, 4
      %s211 = scalar_lea.vmem %s2, %s210
      %s212 = smul.u32 %s19, 2
      %s213 = sadd.s32 %s212, %s20
      %s214 = smul.u32 16, %s213
      %p215 = scmp.lt.s32.totalorder %s18, 1
      %s216 = scalar_select %p215, %s18, 1
      %p217 = scmp.lt.s32.totalorder %s214, 63
      %s218 = scalar_select %p217, %s214, 63
      %s219 = smul.addr %s216, 64
      %s220 = sadd.s32 %s218, %s219
      %s221 = smul.addr %s220, 4
      %s222 = scalar_lea.vmem %s0, %s221
      %s223 = smul.u32 %s19, 2
      %s224 = sadd.s32 %s223, %s20
      %s225 = smul.u32 16, %s224
      %s226 = smul.u32 %s19, 2
      %s227 = sadd.s32 %s226, %s20
      %p228 = scmp.lt.s32.totalorder %s18, 1
      %s229 = scalar_select %p228, %s18, 1
      %p230 = scmp.lt.s32.totalorder %s227, 3
      %s231 = scalar_select %p230, %s227, 3
      %s232 = smul.addr %s229, 4
      %s233 = sadd.s32 %s231, %s232
      %s234 = smul.addr %s233, 2
      %s235 = scalar_lea.vmem %s1, %s234
      %s236 = smul.u32 %s19, 2
      %s237 = sadd.s32 %s236, %s20
      %p238 = scmp.lt.s32.totalorder %s18, 1
      %s239 = scalar_select %p238, %s18, 1
      %p240 = scmp.lt.s32.totalorder %s19, 1
      %s241 = scalar_select %p240, %s19, 1
      %s242 = smul.addr %s239, 2
      %s243 = sadd.s32 %s241, %s242
      %s244 = smul.addr %s243, 4
      %s245 = scalar_lea.vmem %s2, %s244
      %p247 = scmp.eq.s32.totalorder %s20, 0
      // Predicated region
      $region29: #{_lambda_.3} parent=27 // pred_check
        %p248 = pneg %p247
      $region30: #{_lambda_.3} parent=27 // pred_check_branch
        %250 = sbr.rel (%p248) target = $region32
      $region31: #{_lambda_.3} parent=27 // pred_region
        %251 = vst [vmem:[%s245] sm:$0x7] 0.0
      $region32: #{_lambda_.3} parent=27 // pred_fallthru
        _
      %v252 = vld [vmem:[%s245] sm:$0x7]
      %v253 = vld [vmem:[%s235] sm:$0x3]
      %v254 = vld [vmem:[%s222] sm:$0xf]
      %v255 = vld [vmem:[%s222 + $0x4] sm:$0xf]
      %v256 = vld [vmem:[%s222 + $0x8] sm:$0xf]
      %v257 = vld [vmem:[%s222 + $0xc] sm:$0xf]
      %v258 = vld [vmem:[%s222 + $0x10] sm:$0xf]
      %v259 = vld [vmem:[%s222 + $0x14] sm:$0xf]
      %v260 = vld [vmem:[%s222 + $0x18] sm:$0xf]
      %v261 = vld [vmem:[%s222 + $0x1c] sm:$0xf]
      %v262 = vld [vmem:[%s222 + $0x20] sm:$0xf]
      %v263 = vld [vmem:[%s222 + $0x24] sm:$0xf]
      %v264 = vld [vmem:[%s222 + $0x28] sm:$0xf]
      %v265 = vld [vmem:[%s222 + $0x2c] sm:$0xf]
      %v266 = vld [vmem:[%s222 + $0x30] sm:$0xf]
      %v267 = vld [vmem:[%s222 + $0x34] sm:$0xf]
      %v268 = vld [vmem:[%s222 + $0x38] sm:$0xf]
      %v269 = vld [vmem:[%s222 + $0x3c] sm:$0xf]
      %v286 = vunpack.c.l.b16 %v254
      %v287 = vunpack.c.l.b16 %v255
      %v288 = vunpack.c.l.b16 %v256
      %v289 = vunpack.c.l.b16 %v257
      %v290 = vunpack.c.l.b16 %v258
      %v291 = vunpack.c.l.b16 %v259
      %v292 = vunpack.c.l.b16 %v260
      %v293 = vunpack.c.l.b16 %v261
      %v294 = vunpack.c.l.b16 %v262
      %v295 = vunpack.c.l.b16 %v263
      %v296 = vunpack.c.l.b16 %v264
      %v297 = vunpack.c.l.b16 %v265
      %v298 = vunpack.c.l.b16 %v266
      %v299 = vunpack.c.l.b16 %v267
      %v300 = vunpack.c.l.b16 %v268
      %v301 = vunpack.c.l.b16 %v269
      %v302 = vpack.c.b16 %v287, %v286
      %v303 = vpack.c.b16 %v289, %v288
      %v304 = vpack.c.b16 %v291, %v290
      %v305 = vpack.c.b16 %v293, %v292
      %v306 = vpack.c.b16 %v295, %v294
      %v307 = vpack.c.b16 %v297, %v296
      %v308 = vpack.c.b16 %v299, %v298
      %v309 = vpack.c.b16 %v301, %v300
      %318 = vmatprep.subr.bf16.mxu0 0
      %319 = vmatpush1.bf16.msra.mxu0 %v302
      %320 = vmatprep.subr.bf16.mxu0 0
      %321 = vmatpush1.bf16.msra.mxu0 %v303
      %322 = vmatprep.subr.bf16.mxu0 0
      %323 = vmatpush1.bf16.msra.mxu0 %v304
      %324 = vmatprep.subr.bf16.mxu0 0
      %325 = vmatpush1.bf16.msra.mxu0 %v305
      %326 = vmatprep.subr.bf16.mxu0 0
      %327 = vmatpush1.bf16.msra.mxu0 %v306
      %328 = vmatprep.subr.bf16.mxu0 0
      %329 = vmatpush1.bf16.msra.mxu0 %v307
      %330 = vmatprep.subr.bf16.mxu0 0
      %331 = vmatpush1.bf16.msra.mxu0 %v308
      %332 = vmatprep.subr.bf16.mxu0 0
      %333 = vmatpush1.bf16.msra.mxu0 %v309
      %334 = vmatprep.subr.bf16.mxu0 0
      %335 = vmatpush1.bf16.msra.mxu0 0
      %336 = vmatprep.subr.bf16.mxu0 0
      %337 = vmatpush1.bf16.msra.mxu0 0
      %338 = vmatprep.subr.bf16.mxu0 0
      %339 = vmatpush1.bf16.msra.mxu0 0
      %340 = vmatprep.subr.bf16.mxu0 0
      %341 = vmatpush1.bf16.msra.mxu0 0
      %342 = vmatprep.subr.bf16.mxu0 0
      %343 = vmatpush1.bf16.msra.mxu0 0
      %344 = vmatprep.subr.bf16.mxu0 0
      %345 = vmatpush1.bf16.msra.mxu0 0
      %346 = vmatprep.subr.bf16.mxu0 0
      %347 = vmatpush1.bf16.msra.mxu0 0
      %348 = vmatprep.subr.bf16.mxu0 0
      %349 = vmatpush1.bf16.msra.mxu0 0
      %350 = vmatprep.mubr.bf16.mxu0 0
      %351 = vmatmul.mubr.bf16.gmra.mrb[0].mxu0 %v253
      %v352 = vpop.f32.mrb[0].mxu0
      %v353 = vadd.f32 0.0, %v352
      %v354 = vpop.f32.mrb[0].mxu0
      %v355 = vpop.f32.mrb[0].mxu0
      %v356 = vpop.f32.mrb[0].mxu0
      %357 = vdwg.mxu0
      %v358 = vadd.f32 %v252, %v353
      %359 = vst [vmem:[%s245] sm:$0x7] %v358
      %p360 = scmp.lt.s32.totalorder %s18, 1
      %s361 = scalar_select %p360, %s18, 1
      %p362 = scmp.lt.s32.totalorder %s19, 1
      %s363 = scalar_select %p362, %s19, 1
      %s364 = smul.addr %s361, 2
      %s365 = sadd.s32 %s363, %s364
      %s366 = smul.addr %s365, 4
      %s367 = scalar_lea.vmem %s2, %s366
      // Predicated region
      $region33: #{_lambda_.3} parent=27 // pred_check
        %p368 = pneg %p116
      $region34: #{_lambda_.3} parent=27 // pred_check_branch
        %370 = sbr.rel (%p368) target = $region36
      $region35: #{_lambda_.3} parent=27 // pred_region
        _
      $region36: #{_lambda_.3} parent=27 // pred_fallthru
        _
    $region28: #{_lambda_.3} parent=5 // pred_fallthru
      _
    %p371 = scmp.le.s32.totalorder 2, %s8
    // Predicated region
    $region37: #{_lambda_.3} parent=5 // pred_check
      %p372 = pneg %p371
    $region38: #{_lambda_.3} parent=5 // pred_check_branch
      %374 = sbr.rel (%p372) target = $region40
    $region39: #{_lambda_.3} parent=5 // pred_region
      %s375 = ssub.s32 %s8, 2
      // Predicated region
      $region41: #{_lambda_.3} parent=39 // pred_check
        %p376 = pneg %p122
      $region42: #{_lambda_.3} parent=39 // pred_check_branch
        %378 = sbr.rel (%p376) target = $region44
      $region43: #{_lambda_.3} parent=39 // pred_region
        %p379 = scmp.lt.s32.totalorder %s21, 1
        %s380 = scalar_select %p379, %s21, 1
        %p381 = scmp.lt.s32.totalorder %s22, 1
        %s382 = scalar_select %p381, %s22, 1
        %s383 = smul.addr %s380, 2
        %s384 = sadd.s32 %s382, %s383
        %s385 = smul.addr %s384, 4
        %s386 = scalar_lea.vmem %s2, %s385
      $region44: #{_lambda_.3} parent=39 // pred_fallthru
        _
    $region40: #{_lambda_.3} parent=5 // pred_fallthru
      _
  $region6: #{_lambda_.3} parent=0 // loop_footer
    %s12 = sadd.s32 1, %s8
  $region7: #{_lambda_.3} parent=0 // loop_footer_branch
    %7 = sbr.rel target = $region3
  $region8: #{_lambda_.3} parent=0 // loop_exit
    _

</llo_original>
